<compile_context>
chip_gen: v5e
topology: v5e:2x2
jax: 0.10.0
libtpu: 0.0.40
codegen_flags: <defaults>
</compile_context>

<pallas_src>
import jax
import jax.numpy as jnp
import numpy as np
from jax.experimental import pallas as pl
from jax.experimental.pallas import tpu as pltpu

NEG_SLOPE = 0.01  # nn.LeakyReLU default negative_slope


def _lastdown_fused_kernel(x_ref, w1_ref, b1_ref, w2_ref, b2_ref, o_ref):
    """Fused [block1 -> LeakyReLU -> block2 -> LeakyReLU] on one lane-dense tile.

    x_ref  : (1, Cin,  tn)  input tile (channels on sublanes, spatial on lanes)
    w1_ref : (C1,  Cin)     folded block-1 weight  (Ws1 + Wt1 + Wshortcut1)
    b1_ref : (C1,  1)       folded block-1 bias    (bs1 + bt1)
    w2_ref : (Cout, C1)     folded block-2 weight  (Ws2 + Wt2 + Wid/Wshortcut2)
    b2_ref : (Cout, 1)      folded block-2 bias    (bs2 + bt2)
    o_ref  : (1, Cout, tn)
    """
    x = x_ref[0]                                                         # (Cin, tn)
    y = jnp.dot(w1_ref[...], x, preferred_element_type=jnp.float32) + b1_ref[...]
    y = jnp.where(y >= 0, y, NEG_SLOPE * y)                              # (C1, tn)
    z = jnp.dot(w2_ref[...], y, preferred_element_type=jnp.float32) + b2_ref[...]
    z = jnp.where(z >= 0, z, NEG_SLOPE * z)                              # (Cout, tn)
    o_ref[0] = z.astype(o_ref.dtype)


def _pick_tile_n(s, cap):
    """Largest lane-dense tile along S: s itself if it fits, else the biggest
    multiple of 128 that divides s (falling back to a ragged grid)."""
    cap = max(128, int(cap))
    if s <= cap:
        return s
    t = (cap // 128) * 128
    while t >= 128:
        if s % t == 0:
            return t
        t -= 128
    return (cap // 128) * 128  # ragged last block: Pallas masks the partial write


def _run_fused_blocks(xs, w1, b1, w2, b2):
    """xs: (B, Cin, S) -> (B, Cout, S); both LITFormer blocks fused in one call."""
    b, cin, s = xs.shape
    c1 = w1.shape[0]
    cout = w2.shape[0]

    # VMEM budget: double-buffered in/out tiles + fp32 intermediate must stay
    # well under v5e's 16 MiB scoped default (and v7x's 64 MiB physical).
    bytes_per_col = 4 * (2 * cin + 2 * cout + c1)
    cap = (12 * 1024 * 1024) // bytes_per_col
    if b == 1:
        cap = min(cap, max(128, s // 2))  # keep >=2 grid steps for v7x's 2 TCs
    tn = _pick_tile_n(s, cap)
    grid = (b, pl.cdiv(s, tn))

    return pl.pallas_call(
        _lastdown_fused_kernel,
        out_shape=jax.ShapeDtypeStruct((b, cout, s), jnp.float32),
        grid=grid,
        in_specs=[
            pl.BlockSpec((1, cin, tn), lambda i, j: (i, 0, j)),
            pl.BlockSpec((c1, cin), lambda i, j: (0, 0)),
            pl.BlockSpec((c1, 1), lambda i, j: (0, 0)),
            pl.BlockSpec((cout, c1), lambda i, j: (0, 0)),
            pl.BlockSpec((cout, 1), lambda i, j: (0, 0)),
        ],
        out_specs=pl.BlockSpec((1, cout, tn), lambda i, j: (i, 0, j)),
        compiler_params=pltpu.CompilerParams(
            dimension_semantics=("parallel", "parallel")),
    )(xs, w1, b1, w2, b2)


def init_lastdown_params(key, in_channels, out_channels):
    """Synthetic params matching LastDown(in_channels, out_channels) defaults.

    PyTorch Conv3d weights are (Cout, Cin, 1, 1, 1); stored here squeezed to
    (Cout, Cin). Conv biases default to True; shortcut convs have bias=False.
    """
    c1 = 2 * in_channels
    ks = jax.random.split(key, 10)
    sc = 0.1
    n = lambda k, shp: jax.random.normal(k, shp, jnp.float32) * sc
    params = {
        # LITFormerBlock 1: in -> 2*in (shortcut conv exists since in != 2*in)
        "ws1": n(ks[0], (c1, in_channels)),
        "bs1": n(ks[1], (c1,)),
        "wt1": n(ks[2], (c1, in_channels)),
        "bt1": n(ks[3], (c1,)),
        "wsc1": n(ks[4], (c1, in_channels)),
        # LITFormerBlock 2: 2*in -> out
        "ws2": n(ks[5], (out_channels, c1)),
        "bs2": n(ks[6], (out_channels,)),
        "wt2": n(ks[7], (out_channels, c1)),
        "bt2": n(ks[8], (out_channels,)),
    }
    if out_channels != c1:
        params["wsc2"] = n(ks[9], (out_channels, c1))  # shortcut conv, bias=False
    return params


def _maxpool_1x2x2(x):
    """MaxPool3d(kernel=(1,2,2), stride=(1,2,2)) on NCTHW, done in XLA."""
    b, c, t, h, w = x.shape
    hp, wp = h // 2, w // 2
    xp = x[:, :, :, : hp * 2, : wp * 2].reshape(b, c, t, hp, 2, wp, 2)
    return jnp.max(xp, axis=(4, 6))  # (b, c, t, hp, wp)


@jax.jit
def lastdown_forward(x, params):
    """x: (B, Cin, T, H, W) NCTHW float32 -> (B, Cout, T, H//2, W//2)."""
    b, cin, t, h, w = x.shape
    # TODO(synk): the 1x2x2 max-pool is computed by XLA in the wrapper; fusing
    # it into the Pallas kernel would require lane-pair shuffles for little gain.
    xp = _maxpool_1x2x2(x)
    hp, wp = xp.shape[3], xp.shape[4]
    xs = xp.reshape(b, cin, t * hp * wp)  # free reshape: native NC(T*H*W) layout

    # Fold the three 1x1x1 convs of each block into one matmul + bias.
    w1 = params["ws1"] + params["wt1"] + params["wsc1"]
    b1 = (params["bs1"] + params["bt1"]).reshape(-1, 1)
    c1 = params["ws2"].shape[1]
    wid2 = params["wsc2"] if "wsc2" in params else jnp.eye(c1, dtype=jnp.float32)
    w2 = params["ws2"] + params["wt2"] + wid2
    b2 = (params["bs2"] + params["bt2"]).reshape(-1, 1)

    zs = _run_fused_blocks(xs, w1, b1, w2, b2)          # (B, Cout, S)
    cout = w2.shape[0]
    return zs.reshape(b, cout, t, hp, wp)


def _reference_forward(x, params):
    """Pure-JAX reference mirroring the PyTorch LastDown forward (defaults)."""
    def leaky(v):
        return jnp.where(v >= 0, v, NEG_SLOPE * v)

    b, cin, t, h, w = x.shape
    xp = _maxpool_1x2x2(x)
    hp, wp = xp.shape[3], xp.shape[4]
    xm = jnp.transpose(xp, (0, 2, 3, 4, 1)).reshape(-1, cin)     # (M, Cin)

    y = (xm @ params["ws1"].T + params["bs1"]
         + xm @ params["wt1"].T + params["bt1"]
         + xm @ params["wsc1"].T)
    y = leaky(y)

    c1 = params["ws2"].shape[1]
    wid2 = params["wsc2"] if "wsc2" in params else jnp.eye(c1, dtype=jnp.float32)
    z = (y @ params["ws2"].T + params["bs2"]
         + y @ params["wt2"].T + params["bt2"]
         + y @ wid2.T)
    z = leaky(z)

    cout = params["ws2"].shape[0]
    return jnp.transpose(z.reshape(b, t, hp, wp, cout), (0, 4, 1, 2, 3))


if __name__ == "__main__":
    key = jax.random.PRNGKey(0)
    k_x, k_p = jax.random.split(key)

    B, C_IN, C_OUT, T, H, W = 2, 4, 8, 4, 16, 16
    x = jax.random.normal(k_x, (B, C_IN, T, H, W), jnp.float32)
    params = init_lastdown_params(k_p, C_IN, C_OUT)

    out = lastdown_forward(x, params)
    out = jax.block_until_ready(out)

    ref = _reference_forward(x, params)
    assert out.shape == (B, C_OUT, T, H // 2, W // 2), out.shape
    np.testing.assert_allclose(np.asarray(out), np.asarray(ref), rtol=1e-5, atol=1e-5)

    print("KERNEL_OK")
</pallas_src>

<mosaic_0001>
module attributes {stable_mosaic.version = 11 : i64} {
  func.func @_lastdown_fused_kernel(%arg0: i32, %arg1: i32, %arg2: memref<1x4x256xf32, #tpu.memory_space<vmem>>, %arg3: memref<8x4xf32, #tpu.memory_space<vmem>>, %arg4: memref<8x1xf32, #tpu.memory_space<vmem>>, %arg5: memref<8x8xf32, #tpu.memory_space<vmem>>, %arg6: memref<8x1xf32, #tpu.memory_space<vmem>>, %arg7: memref<1x8x256xf32, #tpu.memory_space<vmem>>) attributes {dimension_semantics = [#tpu.dimension_semantics<parallel>, #tpu.dimension_semantics<parallel>], iteration_bounds = array<i64: 2, 1>, scalar_prefetch = 0 : i64, scratch_operands = 0 : i64, tpu.core_type = #tpu.core_type<tc>, window_params = [{transform_indices = @transform_0, window_bounds = array<i64: 1, 4, 256>}, {pipeline_mode = #tpu.pipeline_mode<synchronous>, transform_indices = @transform_1, window_bounds = array<i64: 8, 4>}, {pipeline_mode = #tpu.pipeline_mode<synchronous>, transform_indices = @transform_2, window_bounds = array<i64: 8, 1>}, {pipeline_mode = #tpu.pipeline_mode<synchronous>, transform_indices = @transform_3, window_bounds = array<i64: 8, 8>}, {pipeline_mode = #tpu.pipeline_mode<synchronous>, transform_indices = @transform_4, window_bounds = array<i64: 8, 1>}, {transform_indices = @transform_5, window_bounds = array<i64: 1, 8, 256>}]} {
    %c0 = arith.constant 0 : index
    %c0_0 = arith.constant 0 : index
    %c0_1 = arith.constant 0 : index
    %0 = vector.load %arg2[%c0, %c0_0, %c0_1] : memref<1x4x256xf32, #tpu.memory_space<vmem>>, vector<1x4x256xf32>
    %1 = vector.shape_cast %0 : vector<1x4x256xf32> to vector<4x256xf32>
    %c0_2 = arith.constant 0 : index
    %c0_3 = arith.constant 0 : index
    %2 = vector.load %arg3[%c0_2, %c0_3] : memref<8x4xf32, #tpu.memory_space<vmem>>, vector<8x4xf32>
    %cst = arith.constant dense<0.000000e+00> : vector<8x256xf32>
    %3 = tpu.matmul %2, %1, %cst {dimension_numbers = #tpu.dot_dimension_numbers<[1], [0], [0], [1], [0, 0, 1, 1], [], []>} : vector<8x4xf32>, vector<4x256xf32>, vector<8x256xf32> -> vector<8x256xf32>
    %c0_4 = arith.constant 0 : index
    %c0_5 = arith.constant 0 : index
    %4 = vector.load %arg4[%c0_4, %c0_5] : memref<8x1xf32, #tpu.memory_space<vmem>>, vector<8x1xf32>
    %5 = vector.broadcast %4 : vector<8x1xf32> to vector<8x256xf32>
    %6 = arith.addf %3, %5 : vector<8x256xf32>
    %cst_6 = arith.constant 0.000000e+00 : f32
    %7 = vector.broadcast %cst_6 : f32 to vector<8x256xf32>
    %8 = arith.cmpf oge, %6, %7 : vector<8x256xf32>
    %cst_7 = arith.constant 0.00999999977 : f32
    %9 = vector.broadcast %cst_7 : f32 to vector<8x256xf32>
    %10 = arith.mulf %9, %6 : vector<8x256xf32>
    %11 = arith.select %8, %6, %10 : vector<8x256xi1>, vector<8x256xf32>
    %c0_8 = arith.constant 0 : index
    %c0_9 = arith.constant 0 : index
    %12 = vector.load %arg5[%c0_8, %c0_9] : memref<8x8xf32, #tpu.memory_space<vmem>>, vector<8x8xf32>
    %cst_10 = arith.constant dense<0.000000e+00> : vector<8x256xf32>
    %13 = tpu.matmul %12, %11, %cst_10 {dimension_numbers = #tpu.dot_dimension_numbers<[1], [0], [0], [1], [0, 0, 1, 1], [], []>} : vector<8x8xf32>, vector<8x256xf32>, vector<8x256xf32> -> vector<8x256xf32>
    %c0_11 = arith.constant 0 : index
    %c0_12 = arith.constant 0 : index
    %14 = vector.load %arg6[%c0_11, %c0_12] : memref<8x1xf32, #tpu.memory_space<vmem>>, vector<8x1xf32>
    %15 = vector.broadcast %14 : vector<8x1xf32> to vector<8x256xf32>
    %16 = arith.addf %13, %15 : vector<8x256xf32>
    %cst_13 = arith.constant 0.000000e+00 : f32
    %17 = vector.broadcast %cst_13 : f32 to vector<8x256xf32>
    %18 = arith.cmpf oge, %16, %17 : vector<8x256xf32>
    %cst_14 = arith.constant 0.00999999977 : f32
    %19 = vector.broadcast %cst_14 : f32 to vector<8x256xf32>
    %20 = arith.mulf %19, %16 : vector<8x256xf32>
    %21 = arith.select %18, %16, %20 : vector<8x256xi1>, vector<8x256xf32>
    %c0_15 = arith.constant 0 : index
    %c0_16 = arith.constant 0 : index
    %c0_17 = arith.constant 0 : index
    %22 = vector.load %arg7[%c0_15, %c0_16, %c0_17] : memref<1x8x256xf32, #tpu.memory_space<vmem>>, vector<1x8x256xf32>
    %23 = vector.shape_cast %22 : vector<1x8x256xf32> to vector<8x256xf32>
    %24 = vector.shape_cast %21 : vector<8x256xf32> to vector<1x8x256xf32>
    tpu.vector_store %arg7[%c0_15, %c0_16, %c0_17], %24 {strides = array<i32>} : memref<1x8x256xf32, #tpu.memory_space<vmem>>, vector<1x8x256xf32>,
    return
  }
  func.func @transform_0(%arg0: i32, %arg1: i32) -> (i32, i32, i32) {
    %c0_i32 = arith.constant 0 : i32
    %c0_i32_0 = arith.constant 0 : i32
    return %arg0, %c0_i32, %arg1 : i32, i32, i32
  }
  func.func @transform_1(%arg0: i32, %arg1: i32) -> (i32, i32) {
    %c0_i32 = arith.constant 0 : i32
    %c0_i32_0 = arith.constant 0 : i32
    %c0_i32_1 = arith.constant 0 : i32
    return %c0_i32, %c0_i32_0 : i32, i32
  }
  func.func @transform_2(%arg0: i32, %arg1: i32) -> (i32, i32) {
    %c0_i32 = arith.constant 0 : i32
    %c0_i32_0 = arith.constant 0 : i32
    %c0_i32_1 = arith.constant 0 : i32
    return %c0_i32, %c0_i32_0 : i32, i32
  }
  func.func @transform_3(%arg0: i32, %arg1: i32) -> (i32, i32) {
    %c0_i32 = arith.constant 0 : i32
    %c0_i32_0 = arith.constant 0 : i32
    %c0_i32_1 = arith.constant 0 : i32
    return %c0_i32, %c0_i32_0 : i32, i32
  }
  func.func @transform_4(%arg0: i32, %arg1: i32) -> (i32, i32) {
    %c0_i32 = arith.constant 0 : i32
    %c0_i32_0 = arith.constant 0 : i32
    %c0_i32_1 = arith.constant 0 : i32
    return %c0_i32, %c0_i32_0 : i32, i32
  }
  func.func @transform_5(%arg0: i32, %arg1: i32) -> (i32, i32, i32) {
    %c0_i32 = arith.constant 0 : i32
    %c0_i32_0 = arith.constant 0 : i32
    return %arg0, %c0_i32, %arg1 : i32, i32, i32
  }
}

</mosaic_0001>

<llo_original>
// kernel: lastdown_forward.1
$region0: #{lastdown_forward.1}
  #allocation0 [shape = 'u32[]', space=smem, size = 0x4, offset = 0x4, fixed_abs, tag = 'smem constant byte address 0x4 - core index']
  #allocation1 [shape = 'u32[72,128]{1,0:T(1,128)}', space=vmem, size = 0x9000, scoped, tag = 'internal scratch']
  %s0 = inlined_call_operand.vmem [shape: f32[2,4,256], index: 0, kind: input, shape index: {}]
  %s1 = inlined_call_operand.vmem [shape: f32[8,4], index: 1, kind: input, shape index: {}]
  %s2 = inlined_call_operand.vmem [shape: f32[8,1], index: 2, kind: input, shape index: {}]
  %s3 = inlined_call_operand.vmem [shape: f32[8,8], index: 3, kind: input, shape index: {}]
  %s4 = inlined_call_operand.vmem [shape: f32[8,1], index: 4, kind: input, shape index: {}]
  %s5 = inlined_call_operand.vmem [shape: f32[2,8,256], index: 5, kind: output, shape index: {}]
  %s6 = sld [smem:[#allocation0]]
  $region53: #{lastdown_forward.1} parent=0
    _
  %s8 = ssub.s32 1, %s6
  %s9 = scalar_select 0, %s8, %s6
  loop: start=0, step=1, limit=4
  $region2: #{lastdown_forward.1} parent=0 // loop_pre_header
    _
  $region3: #{lastdown_forward.1} parent=0 // loop_header
    %s11 = sphi 0, %s15
    %p12 = scmp.ge.s32.totalorder %s11, 4
    %s18 = sphi 0, %s30
    %s19 = sphi 0, %s26
    %s20 = sphi 0, %s18
    %s21 = sphi 0, %s19
    %s22 = sphi 0, %s20
    %s23 = sphi 0, %s21
    %s35 = sphi 0, %s37
    %s38 = sphi 0, %s35
    %s39 = sphi 0, %s38
    %s55 = sphi 0, %s39
    %s59 = sphi 0, %s59
    %s61 = sphi 0, %s59
    %s62 = sphi 0, %s61
    %s76 = sphi 0, %s62
    %s80 = sphi 0, %s80
    %s82 = sphi 0, %s80
    %s83 = sphi 0, %s82
    %s97 = sphi 0, %s83
    %s101 = sphi 0, %s101
    %s103 = sphi 0, %s101
    %s104 = sphi 0, %s103
    %s118 = sphi 0, %s104
    %s122 = sphi 0, %s122
    %s124 = sphi 0, %s122
    %s125 = sphi 0, %s124
    %s139 = sphi 0, %s125
    %s147 = sphi 0, %s149
    %s150 = sphi 0, %s147
    %s151 = sphi 0, %s150
    %s167 = sphi 0, %s151
  $region4: #{lastdown_forward.1} parent=0 // loop_header_branch
    %14 = sbr.rel (%p12) target = $region8
  $region5: #{lastdown_forward.1} parent=0 // loop_body
    %s16 = ssub.s32 %s11, 1
    %s17 = ssub.s32 %s11, 2
    %s24 = sadd.s32 1, %s19
    %p25 = scmp.ge.s32.totalorder %s24, 1
    %s26 = scalar_select %p25, 0, %s24
    %s27 = sadd.s32 1, %s18
    %s28 = scalar_select %p25, %s27, %s18
    %p29 = scmp.ge.s32.totalorder %s28, 2
    %s30 = scalar_select %p29, 0, %s28
    %s31 = ssub.s32 %s18, %s30
    %s32 = ssub.s32 %s19, %s26
    %s33 = sor.u32 %s31, %s32
    %p34 = scmp.eq.s32.totalorder %s33, 0
    %s36 = sadd.s32 %s35, 1
    %s37 = scalar_select %p34, %s35, %s36
    %p40 = pneg %p34
    %p41 = scmp.eq.s32.totalorder %s11, 1
    %p42 = por %p40, %p41
    %p43 = scmp.ne.s32.totalorder %s35, %s38
    %p44 = scmp.eq.s32.totalorder %s11, 0
    %p45 = por %p43, %p44
    %p46 = scmp.ne.s32.totalorder %s35, %s38
    %p47 = scmp.eq.s32.totalorder %s16, 1
    %p48 = por %p46, %p47
    %p49 = scmp.ne.s32.totalorder %s38, %s39
    %p50 = scmp.eq.s32.totalorder %s16, 0
    %p51 = por %p49, %p50
    %p52 = scmp.ne.s32.totalorder %s38, %s39
    %p53 = scmp.eq.s32.totalorder %s17, 1
    %p54 = por %p52, %p53
    %p56 = scmp.ne.s32.totalorder %s39, %s55
    %p57 = scmp.eq.s32.totalorder %s17, 0
    %p58 = por %p56, %p57
    %s60 = sadd.s32 %s59, 1
    %p63 = scmp.eq.s32.totalorder %s11, 1
    %p64 = scmp.ne.s32.totalorder %s59, %s61
    %p65 = scmp.eq.s32.totalorder %s11, 0
    %p66 = por %p64, %p65
    %p67 = scmp.ne.s32.totalorder %s59, %s61
    %p68 = scmp.eq.s32.totalorder %s16, 1
    %p69 = por %p67, %p68
    %p70 = scmp.ne.s32.totalorder %s61, %s62
    %p71 = scmp.eq.s32.totalorder %s16, 0
    %p72 = por %p70, %p71
    %p73 = scmp.ne.s32.totalorder %s61, %s62
    %p74 = scmp.eq.s32.totalorder %s17, 1
    %p75 = por %p73, %p74
    %p77 = scmp.ne.s32.totalorder %s62, %s76
    %p78 = scmp.eq.s32.totalorder %s17, 0
    %p79 = por %p77, %p78
    %s81 = sadd.s32 %s80, 1
    %p84 = scmp.eq.s32.totalorder %s11, 1
    %p85 = scmp.ne.s32.totalorder %s80, %s82
    %p86 = scmp.eq.s32.totalorder %s11, 0
    %p87 = por %p85, %p86
    %p88 = scmp.ne.s32.totalorder %s80, %s82
    %p89 = scmp.eq.s32.totalorder %s16, 1
    %p90 = por %p88, %p89
    %p91 = scmp.ne.s32.totalorder %s82, %s83
    %p92 = scmp.eq.s32.totalorder %s16, 0
    %p93 = por %p91, %p92
    %p94 = scmp.ne.s32.totalorder %s82, %s83
    %p95 = scmp.eq.s32.totalorder %s17, 1
    %p96 = por %p94, %p95
    %p98 = scmp.ne.s32.totalorder %s83, %s97
    %p99 = scmp.eq.s32.totalorder %s17, 0
    %p100 = por %p98, %p99
    %s102 = sadd.s32 %s101, 1
    %p105 = scmp.eq.s32.totalorder %s11, 1
    %p106 = scmp.ne.s32.totalorder %s101, %s103
    %p107 = scmp.eq.s32.totalorder %s11, 0
    %p108 = por %p106, %p107
    %p109 = scmp.ne.s32.totalorder %s101, %s103
    %p110 = scmp.eq.s32.totalorder %s16, 1
    %p111 = por %p109, %p110
    %p112 = scmp.ne.s32.totalorder %s103, %s104
    %p113 = scmp.eq.s32.totalorder %s16, 0
    %p114 = por %p112, %p113
    %p115 = scmp.ne.s32.totalorder %s103, %s104
    %p116 = scmp.eq.s32.totalorder %s17, 1
    %p117 = por %p115, %p116
    %p119 = scmp.ne.s32.totalorder %s104, %s118
    %p120 = scmp.eq.s32.totalorder %s17, 0
    %p121 = por %p119, %p120
    %s123 = sadd.s32 %s122, 1
    %p126 = scmp.eq.s32.totalorder %s11, 1
    %p127 = scmp.ne.s32.totalorder %s122, %s124
    %p128 = scmp.eq.s32.totalorder %s11, 0
    %p129 = por %p127, %p128
    %p130 = scmp.ne.s32.totalorder %s122, %s124
    %p131 = scmp.eq.s32.totalorder %s16, 1
    %p132 = por %p130, %p131
    %p133 = scmp.ne.s32.totalorder %s124, %s125
    %p134 = scmp.eq.s32.totalorder %s16, 0
    %p135 = por %p133, %p134
    %p136 = scmp.ne.s32.totalorder %s124, %s125
    %p137 = scmp.eq.s32.totalorder %s17, 1
    %p138 = por %p136, %p137
    %p140 = scmp.ne.s32.totalorder %s125, %s139
    %p141 = scmp.eq.s32.totalorder %s17, 0
    %p142 = por %p140, %p141
    %s143 = ssub.s32 %s18, %s30
    %s144 = ssub.s32 %s19, %s26
    %s145 = sor.u32 %s143, %s144
    %p146 = scmp.eq.s32.totalorder %s145, 0
    %s148 = sadd.s32 %s147, 1
    %s149 = scalar_select %p146, %s147, %s148
    %p152 = pneg %p146
    %p153 = scmp.eq.s32.totalorder %s11, 1
    %p154 = por %p152, %p153
    %p155 = scmp.ne.s32.totalorder %s147, %s150
    %p156 = scmp.eq.s32.totalorder %s11, 0
    %p157 = por %p155, %p156
    %p158 = scmp.ne.s32.totalorder %s147, %s150
    %p159 = scmp.eq.s32.totalorder %s16, 1
    %p160 = por %p158, %p159
    %p161 = scmp.ne.s32.totalorder %s150, %s151
    %p162 = scmp.eq.s32.totalorder %s16, 0
    %p163 = por %p161, %p162
    %p164 = scmp.ne.s32.totalorder %s150, %s151
    %p165 = scmp.eq.s32.totalorder %s17, 1
    %p166 = por %p164, %p165
    %p168 = scmp.ne.s32.totalorder %s151, %s167
    %p169 = scmp.eq.s32.totalorder %s17, 0
    %p170 = por %p168, %p169
    %p171 = scmp.le.s32.totalorder 1, %s11
    %p172 = scmp.lt.s32.totalorder %s11, 3
    %p173 = pnand %p171, %p172
    %p174 = pneg %p173
    // Predicated region
    $region9: #{lastdown_forward.1} parent=5 // pred_check
      _
    $region10: #{lastdown_forward.1} parent=5 // pred_check_branch
      %176 = sbr.rel (%p173) target = $region12
    $region11: #{lastdown_forward.1} parent=5 // pred_region
      %s177 = ssub.s32 %s11, 1
      // Predicated region
      $region13: #{lastdown_forward.1} parent=11 // pred_check
        %p178 = pneg %p72
      $region14: #{lastdown_forward.1} parent=11 // pred_check_branch
        %180 = sbr.rel (%p178) target = $region16
      $region15: #{lastdown_forward.1} parent=11 // pred_region
        _
      $region16: #{lastdown_forward.1} parent=11 // pred_fallthru
        _
      // Predicated region
      $region17: #{lastdown_forward.1} parent=11 // pred_check
        %p181 = pneg %p93
      $region18: #{lastdown_forward.1} parent=11 // pred_check_branch
        %183 = sbr.rel (%p181) target = $region20
      $region19: #{lastdown_forward.1} parent=11 // pred_region
        _
      $region20: #{lastdown_forward.1} parent=11 // pred_fallthru
        _
      // Predicated region
      $region21: #{lastdown_forward.1} parent=11 // pred_check
        %p184 = pneg %p114
      $region22: #{lastdown_forward.1} parent=11 // pred_check_branch
        %186 = sbr.rel (%p184) target = $region24
      $region23: #{lastdown_forward.1} parent=11 // pred_region
        _
      $region24: #{lastdown_forward.1} parent=11 // pred_fallthru
        _
      // Predicated region
      $region25: #{lastdown_forward.1} parent=11 // pred_check
        %p187 = pneg %p135
      $region26: #{lastdown_forward.1} parent=11 // pred_check_branch
        %189 = sbr.rel (%p187) target = $region28
      $region27: #{lastdown_forward.1} parent=11 // pred_region
        _
      $region28: #{lastdown_forward.1} parent=11 // pred_fallthru
        _
    $region12: #{lastdown_forward.1} parent=5 // pred_fallthru
      _
    %p190 = scmp.lt.s32.totalorder %s11, 2
    // Predicated region
    $region29: #{lastdown_forward.1} parent=5 // pred_check
      %p191 = pneg %p190
    $region30: #{lastdown_forward.1} parent=5 // pred_check_branch
      %193 = sbr.rel (%p191) target = $region32
    $region31: #{lastdown_forward.1} parent=5 // pred_region
      // Predicated region
      $region33: #{lastdown_forward.1} parent=31 // pred_check
        %p194 = pneg %p45
      $region34: #{lastdown_forward.1} parent=31 // pred_check_branch
        %196 = sbr.rel (%p194) target = $region36
      $region35: #{lastdown_forward.1} parent=31 // pred_region
        %s197 = smul.u32 2, %s19
        %p198 = scmp.lt.s32.totalorder %s18, 1
        %s199 = scalar_select %p198, %s18, 1
        %p200 = scmp.lt.s32.totalorder %s197, 1
        %s201 = scalar_select %p200, %s197, 1
        %s202 = smul.addr %s199, 2
        %s203 = sadd.s32 %s201, %s202
        %s204 = smul.addr %s203, 4
        %s205 = scalar_lea.vmem %s0, %s204
        %s206 = smul.u32 2, %s19
      $region36: #{lastdown_forward.1} parent=31 // pred_fallthru
        _
    $region32: #{lastdown_forward.1} parent=5 // pred_fallthru
      _
    %p207 = scmp.le.s32.totalorder 1, %s11
    %p208 = scmp.lt.s32.totalorder %s11, 3
    %p209 = pnand %p207, %p208
    %p210 = pneg %p209
    // Predicated region
    $region37: #{lastdown_forward.1} parent=5 // pred_check
      _
    $region38: #{lastdown_forward.1} parent=5 // pred_check_branch
      %212 = sbr.rel (%p209) target = $region40
    $region39: #{lastdown_forward.1} parent=5 // pred_region
      %s213 = ssub.s32 %s11, 1
      %s214 = smul.u32 2, %s21
      %p215 = scmp.lt.s32.totalorder %s20, 1
      %s216 = scalar_select %p215, %s20, 1
      %p217 = scmp.lt.s32.totalorder %s214, 1
      %s218 = scalar_select %p217, %s214, 1
      %s219 = smul.addr %s216, 2
      %s220 = sadd.s32 %s218, %s219
      %s221 = smul.addr %s220, 4
      %s222 = scalar_lea.vmem %s0, %s221
      %p223 = pneg %p51
      %p224 = pneg %p48
      %p225 = pneg %p72
      %p226 = pneg %p69
      %p227 = pneg %p93
      %p228 = pneg %p90
      %p229 = pneg %p114
      %p230 = pneg %p111
      %p231 = pneg %p135
      %p232 = pneg %p132
      %p233 = pneg %p163
      %p234 = pneg %p160
      %s235 = smul.u32 2, %s21
      %p236 = scmp.lt.s32.totalorder %s20, 1
      %s237 = scalar_select %p236, %s20, 1
      %p238 = scmp.lt.s32.totalorder %s235, 1
      %s239 = scalar_select %p238, %s235, 1
      %s240 = smul.addr %s237, 2
      %s241 = sadd.s32 %s239, %s240
      %s242 = smul.addr %s241, 8
      %s243 = scalar_lea.vmem %s5, %s242
      %s244 = smul.u32 2, %s21
      %p245 = scmp.lt.s32.totalorder %s20, 1
      %s246 = scalar_select %p245, %s20, 1
      %p247 = scmp.lt.s32.totalorder %s244, 1
      %s248 = scalar_select %p247, %s244, 1
      %s249 = smul.addr %s246, 2
      %s250 = sadd.s32 %s248, %s249
      %s251 = smul.addr %s250, 4
      %s252 = scalar_lea.vmem %s0, %s251
      %s253 = smul.u32 2, %s21
      %s254 = smul.u32 2, %s21
      %p255 = scmp.lt.s32.totalorder %s20, 1
      %s256 = scalar_select %p255, %s20, 1
      %p257 = scmp.lt.s32.totalorder %s254, 1
      %s258 = scalar_select %p257, %s254, 1
      %s259 = smul.addr %s256, 2
      %s260 = sadd.s32 %s258, %s259
      %s261 = smul.addr %s260, 8
      %s262 = scalar_lea.vmem %s5, %s261
      %s263 = smul.u32 2, %s21
      %v264 = vld [vmem:[%s252] sm:$0xff]
      %v265 = vld [vmem:[%s1] sm:$0xff]
      %v266 = vld [vmem:[%s2] sm:$0xff]
      %268 = vset.pattern.permute.xlu0 0
      %269 = vperm.xlu0 %268, %v266
      %v270 = vpop.permute.xlu0 %269
      %273 = vst [vmem:[#allocation1] ss:$2 sm:$0xff] %v264
      %v274 = vld.sshfl [vmem:[#allocation1] sm:$0xff pattern:$0x75316420]
      %v275 = vld.sshfl [vmem:[#allocation1 + $0x8] sm:$0xff pattern:$0x75316420]
      %vm276 = vcmask 31744
      %v278 = vsel %vm276, %v265, 0
      %vm280 = vcmask 1043456
      %v281 = vsel %vm280, %v274, 0
      %v283 = vsel %vm280, %v275, 0
      %285 = vmatpush.msra.mxu0 0.0
      %286 = vmatpush.msra.mxu0 0.0
      %287 = vmatpush.msra.mxu0 0.0
      %288 = vmatpush.msra.mxu0 0.0
      %289 = vmatpush.msra.mxu0 0.0
      %290 = vmatpush.msra.mxu0 0.0
      %291 = vmatpush.msra.mxu0 0.0
      %292 = vmatpush.msra.mxu0 0.0
      %293 = vmatpush.msra.mxu0 0.0
      %294 = vmatpush.msra.mxu0 0.0
      %295 = vmatpush.msra.mxu0 0.0
      %296 = vmatpush.msra.mxu0 0.0
      %297 = vmatpush.msra.mxu0 0.0
      %298 = vmatpush.msra.mxu0 0.0
      %299 = vmatpush.msra.mxu0 0.0
      %300 = vmatpush.msra.mxu0 %v281
      %301 = vmatmul.f32.gmra.mxu0 %v278
      %v302 = vpop.f32.mrf.mxu0
      %v303 = vadd.f32 %v270, %v302
      %304 = vdwg.mxu0
      %305 = vmatpush.msra.mxu0 0.0
      %306 = vmatpush.msra.mxu0 0.0
      %307 = vmatpush.msra.mxu0 0.0
      %308 = vmatpush.msra.mxu0 0.0
      %309 = vmatpush.msra.mxu0 0.0
      %310 = vmatpush.msra.mxu0 0.0
      %311 = vmatpush.msra.mxu0 0.0
      %312 = vmatpush.msra.mxu0 0.0
      %313 = vmatpush.msra.mxu0 0.0
      %314 = vmatpush.msra.mxu0 0.0
      %315 = vmatpush.msra.mxu0 0.0
      %316 = vmatpush.msra.mxu0 0.0
      %317 = vmatpush.msra.mxu0 0.0
      %318 = vmatpush.msra.mxu0 0.0
      %319 = vmatpush.msra.mxu0 0.0
      %320 = vmatpush.msra.mxu0 %v283
      %321 = vmatmul.f32.gmra.mxu0 %v278
      %v322 = vpop.f32.mrf.mxu0
      %v323 = vadd.f32 %v270, %v322
      %324 = vdwg.mxu0
      %vm325 = vcmp.ge.f32.partialorder %v303, 0.0
      %vm326 = vcmp.ge.f32.partialorder %v323, 0.0
      %v327 = vmul.f32 %v303, 0.01
      %v328 = vmul.f32 %v323, 0.01
      %v329 = vsel %vm325, %v303, %v327
      %v330 = vsel %vm326, %v323, %v328
      %v331 = vld [vmem:[%s3] sm:$0xff]
      %v332 = vld [vmem:[%s4] sm:$0xff]
      %334 = vset.pattern.permute.xlu0 0
      %335 = vperm.xlu0 %334, %v332
      %v336 = vpop.permute.xlu0 %335
      %vm338 = vcmask 64512
      %v340 = vsel %vm338, %v331, 0
      %342 = vmatpush.msra.mxu0 0.0
      %343 = vmatpush.msra.mxu0 0.0
      %344 = vmatpush.msra.mxu0 0.0
      %345 = vmatpush.msra.mxu0 0.0
      %346 = vmatpush.msra.mxu0 0.0
      %347 = vmatpush.msra.mxu0 0.0
      %348 = vmatpush.msra.mxu0 0.0
      %349 = vmatpush.msra.mxu0 0.0
      %350 = vmatpush.msra.mxu0 0.0
      %351 = vmatpush.msra.mxu0 0.0
      %352 = vmatpush.msra.mxu0 0.0
      %353 = vmatpush.msra.mxu0 0.0
      %354 = vmatpush.msra.mxu0 0.0
      %355 = vmatpush.msra.mxu0 0.0
      %356 = vmatpush.msra.mxu0 0.0
      %357 = vmatpush.msra.mxu0 %v329
      %358 = vmatmul.f32.gmra.mxu0 %v340
      %v359 = vpop.f32.mrf.mxu0
      %v360 = vadd.f32 %v336, %v359
      %361 = vdwg.mxu0
      %362 = vmatpush.msra.mxu0 0.0
      %363 = vmatpush.msra.mxu0 0.0
      %364 = vmatpush.msra.mxu0 0.0
      %365 = vmatpush.msra.mxu0 0.0
      %366 = vmatpush.msra.mxu0 0.0
      %367 = vmatpush.msra.mxu0 0.0
      %368 = vmatpush.msra.mxu0 0.0
      %369 = vmatpush.msra.mxu0 0.0
      %370 = vmatpush.msra.mxu0 0.0
      %371 = vmatpush.msra.mxu0 0.0
      %372 = vmatpush.msra.mxu0 0.0
      %373 = vmatpush.msra.mxu0 0.0
      %374 = vmatpush.msra.mxu0 0.0
      %375 = vmatpush.msra.mxu0 0.0
      %376 = vmatpush.msra.mxu0 0.0
      %377 = vmatpush.msra.mxu0 %v330
      %378 = vmatmul.f32.gmra.mxu0 %v340
      %v379 = vpop.f32.mrf.mxu0
      %v380 = vadd.f32 %v336, %v379
      %381 = vdwg.mxu0
      %vm382 = vcmp.ge.f32.partialorder %v360, 0.0
      %vm383 = vcmp.ge.f32.partialorder %v380, 0.0
      %v384 = vmul.f32 %v360, 0.01
      %v385 = vmul.f32 %v380, 0.01
      %v386 = vsel %vm382, %v360, %v384
      %v387 = vsel %vm383, %v380, %v385
      %388 = vst [vmem:[%s262] sm:$0xff] %v386
      %389 = vst [vmem:[%s262 + $0x8] sm:$0xff] %v387
      %s390 = smul.u32 2, %s21
      %p391 = scmp.lt.s32.totalorder %s20, 1
      %s392 = scalar_select %p391, %s20, 1
      %p393 = scmp.lt.s32.totalorder %s390, 1
      %s394 = scalar_select %p393, %s390, 1
      %s395 = smul.addr %s392, 2
      %s396 = sadd.s32 %s394, %s395
      %s397 = smul.addr %s396, 8
      %s398 = scalar_lea.vmem %s5, %s397
      // Predicated region
      $region41: #{lastdown_forward.1} parent=39 // pred_check
        %p399 = pneg %p160
      $region42: #{lastdown_forward.1} parent=39 // pred_check_branch
        %401 = sbr.rel (%p399) target = $region44
      $region43: #{lastdown_forward.1} parent=39 // pred_region
        %s402 = smul.u32 2, %s21
      $region44: #{lastdown_forward.1} parent=39 // pred_fallthru
        _
    $region40: #{lastdown_forward.1} parent=5 // pred_fallthru
      _
    %p403 = scmp.le.s32.totalorder 2, %s11
    // Predicated region
    $region45: #{lastdown_forward.1} parent=5 // pred_check
      %p404 = pneg %p403
    $region46: #{lastdown_forward.1} parent=5 // pred_check_branch
      %406 = sbr.rel (%p404) target = $region48
    $region47: #{lastdown_forward.1} parent=5 // pred_region
      %s407 = ssub.s32 %s11, 2
      // Predicated region
      $region49: #{lastdown_forward.1} parent=47 // pred_check
        %p408 = pneg %p166
      $region50: #{lastdown_forward.1} parent=47 // pred_check_branch
        %410 = sbr.rel (%p408) target = $region52
      $region51: #{lastdown_forward.1} parent=47 // pred_region
        %s411 = smul.u32 2, %s23
        %p412 = scmp.lt.s32.totalorder %s22, 1
        %s413 = scalar_select %p412, %s22, 1
        %p414 = scmp.lt.s32.totalorder %s411, 1
        %s415 = scalar_select %p414, %s411, 1
        %s416 = smul.addr %s413, 2
        %s417 = sadd.s32 %s415, %s416
        %s418 = smul.addr %s417, 8
        %s419 = scalar_lea.vmem %s5, %s418
      $region52: #{lastdown_forward.1} parent=47 // pred_fallthru
        _
    $region48: #{lastdown_forward.1} parent=5 // pred_fallthru
      _
  $region6: #{lastdown_forward.1} parent=0 // loop_footer
    %s15 = sadd.s32 1, %s11
  $region7: #{lastdown_forward.1} parent=0 // loop_footer_branch
    %10 = sbr.rel target = $region3
  $region8: #{lastdown_forward.1} parent=0 // loop_exit
    _

</llo_original>
